<compile_context>
chip_gen: v5e
topology: v5e:2x2
jax: 0.10.0
libtpu: 0.0.40
codegen_flags: <defaults>
</compile_context>

<pallas_src>
import functools

import numpy as np

import jax
import jax.numpy as jnp
from jax import lax
from jax.experimental import pallas as pl
from jax.experimental.pallas import tpu as pltpu

_LANE = 128        # TPU lane width
_SUBLANE = 8       # f32 sublane height
_NEG_INF = -1e30   # finite "minus infinity" for padded logit lanes
_MAX_TIME_CHUNK = 32     # RNN steps fused per grid step
_MAX_BATCH_BLOCK = 128   # padded batch rows per (parallel) batch grid block


def _round_up(x, m):
    return ((x + m - 1) // m) * m


def rnn_chunk_kernel(base_ref, mem0_ref, x_ref, wchr_ref, wmem_ref,   # inputs
                     preds_ref, memout_ref,                           # outputs
                     xw_ref,                                          # scratch
                     *, seq_len):
    """One grid step == one (batch block, time chunk).

    Fused lane layout (NP = H_pad + O_pad):
      xw[t]   = base + x_t @ W_chr          # hoisted, one big matmul per chunk
      pre     = xw[t] + mem @ W_mem         # per-step (serial) matmul
      mem'    = tanh(pre[:, :H_pad])
      logp_t  = log_softmax(pre[:, H_pad:], axis=-1)
    `memout_ref` (block index constant over the time axis) is the recurrent
    carry for this batch block; `xw_ref` caches the chunk's input contribution.
    """
    tc = pl.program_id(1)
    t_inner, bb, ip = x_ref.shape
    hp = memout_ref.shape[-1]
    np_ = xw_ref.shape[-1]

    @pl.when(tc == 0)
    def _init():
        memout_ref[...] = mem0_ref[...]

    # Non-recurrent input contribution for the whole chunk, hoisted off the
    # serial recurrence: one (t_inner*bb, IP) @ (IP, NP) MXU push instead of
    # t_inner tiny ones.
    x_flat = x_ref[...].reshape(t_inner * bb, ip)
    xw = jnp.dot(x_flat, wchr_ref[...], preferred_element_type=jnp.float32)
    xw_ref[...] = xw.reshape(t_inner, bb, np_) + base_ref[...][None]

    wmem = wmem_ref[...]
    has_tail = (seq_len % t_inner) != 0  # Python bool: time axis was padded

    def step(t, mem):
        pre = xw_ref[t] + jnp.dot(mem, wmem, preferred_element_type=jnp.float32)

        # hidden half -> tanh (padded lanes are exactly 0 and stay 0)
        new_mem = jnp.tanh(pre[:, :hp])

        # output half -> numerically stable log_softmax (padded lanes ~ -1e30)
        logits = pre[:, hp:]
        m = jnp.max(logits, axis=-1, keepdims=True)
        shifted = logits - m
        lse = jnp.log(jnp.sum(jnp.exp(shifted), axis=-1, keepdims=True))
        preds_ref[t] = shifted - lse

        if has_tail:
            # Padded time steps must not advance the recurrent memory.
            new_mem = jnp.where(tc * t_inner + t < seq_len, new_mem, mem)
        return new_mem

    memout_ref[...] = lax.fori_loop(0, t_inner, step, memout_ref[...],
                                    unroll=True)


def rnn_sequence(country_one_hot, inputs_one_hot, memory, params):
    """Fused T-step RNN forward in a single pallas_call.

    country_one_hot : (B, n_categories) f32 (constant over the sequence)
    inputs_one_hot  : (T, B, input_size) f32
    memory          : (B, hidden_size)  f32
    Returns (log_probs: (T, B, output_size), final_memory: (B, hidden_size)).
    """
    T, B, I = inputs_one_hot.shape
    H = memory.shape[1]
    O = params["output_size"]
    HP, OP, IP = params["hidden_pad"], params["output_pad"], params["input_pad"]
    NP = HP + OP

    # Time chunking: fuse up to _MAX_TIME_CHUNK RNN steps per grid step.
    t_inner = min(T, _MAX_TIME_CHUNK)
    TP = _round_up(T, t_inner)
    n_tc = TP // t_inner

    # Batch blocking: pad to sublanes, split into blocks for the parallel axis.
    BP0 = _round_up(max(B, _SUBLANE), _SUBLANE)
    BB = min(BP0, _MAX_BATCH_BLOCK)
    BP = _round_up(BP0, BB)
    n_bb = BP // BB

    f32 = jnp.float32
    C = params["n_categories"]
    country_p = jnp.zeros((BP, C), f32).at[:B].set(country_one_hot.astype(f32))
    mem_p = jnp.zeros((BP, HP), f32).at[:B, :H].set(memory.astype(f32))
    x_p = jnp.zeros((TP, BP, IP), f32).at[:T, :B, :I].set(
        inputs_one_hot.astype(f32))

    # Constant-over-time contribution, precomputed in plain XLA:
    #   base = country @ W_cat + bias   (padded logit lanes carry -1e30)
    base = country_p @ params["w_cat"] + params["bias"]

    kernel = functools.partial(rnn_chunk_kernel, seq_len=T)

    grid_spec = pltpu.PrefetchScalarGridSpec(
        num_scalar_prefetch=0,
        grid=(n_bb, n_tc),
        in_specs=[
            pl.BlockSpec((BB, NP), lambda b, tc: (b, 0)),              # base
            pl.BlockSpec((BB, HP), lambda b, tc: (b, 0)),              # init mem
            pl.BlockSpec((t_inner, BB, IP), lambda b, tc: (tc, b, 0)),  # x chunk
            pl.BlockSpec((IP, NP), lambda b, tc: (0, 0)),              # W_chr (resident)
            pl.BlockSpec((HP, NP), lambda b, tc: (0, 0)),              # W_mem (resident)
        ],
        out_specs=(
            pl.BlockSpec((t_inner, BB, OP), lambda b, tc: (tc, b, 0)),  # log-probs
            pl.BlockSpec((BB, HP), lambda b, tc: (b, 0)),               # mem carry
        ),
        scratch_shapes=[pltpu.VMEM((t_inner, BB, NP), jnp.float32)],    # xw cache
    )

    preds_p, mem_out_p = pl.pallas_call(
        kernel,
        out_shape=(
            jax.ShapeDtypeStruct((TP, BP, OP), jnp.float32),
            jax.ShapeDtypeStruct((BP, HP), jnp.float32),
        ),
        grid_spec=grid_spec,
        compiler_params=pltpu.CompilerParams(
            # batch blocks are independent (parallel / megacore-shardable);
            # time chunks carry the recurrence (must stay sequential).
            dimension_semantics=("parallel", "arbitrary"),
        ),
    )(base, mem_p, x_p, params["w_chr"], params["w_mem"])

    return preds_p[:T, :B, :O], mem_out_p[:B, :H]


def rnn_cell(country_one_hot, input_one_hot, memory, params):
    """Single RNN step matching the PyTorch module's forward signature."""
    preds, new_mem = rnn_sequence(country_one_hot, input_one_hot[None], memory,
                                  params)
    return preds[0], new_mem


def init_params(key, n_categories, input_size, hidden_size):
    """nn.Linear-style init on the concatenated input, packed for the kernel."""
    output_size = input_size
    comb = n_categories + input_size + hidden_size
    kh, ko = jax.random.split(key)

    def linear(k, fan_in, out_dim):
        bound = 1.0 / float(np.sqrt(fan_in))
        kw, kb = jax.random.split(k)
        w = jax.random.uniform(kw, (fan_in, out_dim), jnp.float32, -bound, bound)
        b = jax.random.uniform(kb, (out_dim,), jnp.float32, -bound, bound)
        return w, b

    wh, bh = linear(kh, comb, hidden_size)   # stored pre-transposed: (in, out)
    wo, bo = linear(ko, comb, output_size)

    HP = _round_up(hidden_size, _LANE)
    OP = _round_up(output_size, _LANE)
    IP = _round_up(input_size, _LANE)
    NP = HP + OP

    def fuse(r0, r1, k_pad):
        """Pack the [hidden | output] column blocks into one lane-padded slab."""
        k = r1 - r0
        w = jnp.zeros((k_pad, NP), jnp.float32)
        w = w.at[:k, :hidden_size].set(wh[r0:r1])
        w = w.at[:k, HP:HP + output_size].set(wo[r0:r1])
        return w

    c0, c1 = 0, n_categories
    i0, i1 = c1, c1 + input_size
    m0, m1 = i1, i1 + hidden_size

    bias = jnp.full((1, NP), _NEG_INF, jnp.float32)   # padded logit lanes -> -inf
    bias = bias.at[0, :HP].set(0.0)                   # padded hidden lanes -> 0
    bias = bias.at[0, :hidden_size].set(bh)
    bias = bias.at[0, HP:HP + output_size].set(bo)

    return {
        "n_categories": n_categories,
        "input_size": input_size,
        "hidden_size": hidden_size,
        "output_size": output_size,
        "hidden_pad": HP,
        "output_pad": OP,
        "input_pad": IP,
        "w_cat": fuse(c0, c1, n_categories),   # used only in the wrapper (base)
        "w_chr": fuse(i0, i1, IP),
        "w_mem": fuse(m0, m1, HP),
        "bias": bias,
        # raw (unfused) parameters kept for reference checking
        "ref_wh": wh, "ref_bh": bh, "ref_wo": wo, "ref_bo": bo,
    }


def init_memory(batch, hidden_size):
    # mirrors RNN.initMemory(): torch.zeros(1, hidden_size), broadcast over batch
    return jnp.zeros((batch, hidden_size), jnp.float32)


if __name__ == "__main__":
    n_categories, input_size, hidden_size = 8, 32, 32
    batch, seq_len = 2, 8

    key = jax.random.PRNGKey(0)
    kp, kc, ki = jax.random.split(key, 3)

    params = init_params(kp, n_categories, input_size, hidden_size)

    cat_idx = jax.random.randint(kc, (batch,), 0, n_categories)
    chr_idx = jax.random.randint(ki, (seq_len, batch), 0, input_size)
    country_one_hot = jax.nn.one_hot(cat_idx, n_categories, dtype=jnp.float32)
    inputs_one_hot = jax.nn.one_hot(chr_idx, input_size, dtype=jnp.float32)
    memory = init_memory(batch, hidden_size)

    # fused multi-step kernel (the whole sequence in one pallas_call / one grid step)
    preds, final_mem = rnn_sequence(country_one_hot, inputs_one_hot, memory, params)
    jax.block_until_ready((preds, final_mem))

    # single-step call matching the original module's forward signature
    pred0, mem1 = rnn_cell(country_one_hot, inputs_one_hot[0], memory, params)
    jax.block_until_ready((pred0, mem1))

    # pure-JAX step-by-step reference
    wh, bh = params["ref_wh"], params["ref_bh"]
    wo, bo = params["ref_wo"], params["ref_bo"]
    ref_mem = memory
    ref_preds, ref_mems = [], []
    for t in range(seq_len):
        comb = jnp.concatenate([country_one_hot, inputs_one_hot[t], ref_mem], axis=1)
        ref_mem = jnp.tanh(comb @ wh + bh)
        ref_preds.append(jax.nn.log_softmax(comb @ wo + bo, axis=-1))
        ref_mems.append(ref_mem)
    ref_preds = jnp.stack(ref_preds)

    # tolerances account for MXU vs XLA f32 matmul rounding over the recurrence
    assert jnp.allclose(preds, ref_preds, atol=2e-4, rtol=2e-4), (
        float(jnp.max(jnp.abs(preds - ref_preds))))
    assert jnp.allclose(final_mem, ref_mem, atol=2e-4, rtol=2e-4), (
        float(jnp.max(jnp.abs(final_mem - ref_mem))))
    assert jnp.allclose(pred0, ref_preds[0], atol=2e-4, rtol=2e-4)
    assert jnp.allclose(mem1, ref_mems[0], atol=2e-4, rtol=2e-4)

    print("KERNEL_OK")
</pallas_src>

<mosaic_0001>
module attributes {stable_mosaic.version = 11 : i64} {
  func.func @rnn_chunk_kernel(%arg0: i32, %arg1: i32, %arg2: memref<8x256xf32, #tpu.memory_space<vmem>>, %arg3: memref<8x128xf32, #tpu.memory_space<vmem>>, %arg4: memref<8x8x128xf32, #tpu.memory_space<vmem>>, %arg5: memref<128x256xf32, #tpu.memory_space<vmem>>, %arg6: memref<128x256xf32, #tpu.memory_space<vmem>>, %arg7: memref<8x8x128xf32, #tpu.memory_space<vmem>>, %arg8: memref<8x128xf32, #tpu.memory_space<vmem>>, %arg9: memref<8x8x256xf32, #tpu.memory_space<vmem>>) attributes {dimension_semantics = [#tpu.dimension_semantics<parallel>, #tpu.dimension_semantics<arbitrary>], iteration_bounds = array<i64: 1, 1>, scalar_prefetch = 0 : i64, scratch_operands = 1 : i64, tpu.core_type = #tpu.core_type<tc>, window_params = [{transform_indices = @transform_0, window_bounds = array<i64: 8, 256>}, {transform_indices = @transform_1, window_bounds = array<i64: 8, 128>}, {transform_indices = @transform_2, window_bounds = array<i64: 8, 8, 128>}, {pipeline_mode = #tpu.pipeline_mode<synchronous>, transform_indices = @transform_3, window_bounds = array<i64: 128, 256>}, {pipeline_mode = #tpu.pipeline_mode<synchronous>, transform_indices = @transform_4, window_bounds = array<i64: 128, 256>}, {transform_indices = @transform_5, window_bounds = array<i64: 8, 8, 128>}, {transform_indices = @transform_6, window_bounds = array<i64: 8, 128>}]} {
    %c0_i32 = arith.constant 0 : i32
    %0 = arith.cmpi eq, %arg1, %c0_i32 : i32
    %1 = arith.extui %0 : i1 to i32
    %c0_i32_0 = arith.constant 0 : i32
    %2 = arith.cmpi ne, %1, %c0_i32_0 : i32
    scf.if %2 {
      %c0_73 = arith.constant 0 : index
      %c0_74 = arith.constant 0 : index
      %192 = vector.load %arg3[%c0_73, %c0_74] : memref<8x128xf32, #tpu.memory_space<vmem>>, vector<8x128xf32>
      %c0_75 = arith.constant 0 : index
      %c0_76 = arith.constant 0 : index
      %193 = vector.load %arg8[%c0_75, %c0_76] : memref<8x128xf32, #tpu.memory_space<vmem>>, vector<8x128xf32>
      tpu.vector_store %arg8[%c0_75, %c0_76], %192 {strides = array<i32>} : memref<8x128xf32, #tpu.memory_space<vmem>>, vector<8x128xf32>,
    } else {
    }
    %c0 = arith.constant 0 : index
    %c0_1 = arith.constant 0 : index
    %c0_2 = arith.constant 0 : index
    %3 = vector.load %arg4[%c0, %c0_1, %c0_2] : memref<8x8x128xf32, #tpu.memory_space<vmem>>, vector<8x8x128xf32>
    %4 = vector.shape_cast %3 : vector<8x8x128xf32> to vector<64x128xf32>
    %c0_3 = arith.constant 0 : index
    %c0_4 = arith.constant 0 : index
    %5 = vector.load %arg5[%c0_3, %c0_4] : memref<128x256xf32, #tpu.memory_space<vmem>>, vector<128x256xf32>
    %cst = arith.constant dense<0.000000e+00> : vector<64x256xf32>
    %6 = tpu.matmul %4, %5, %cst {dimension_numbers = #tpu.dot_dimension_numbers<[1], [0], [0], [1], [0, 0, 1, 1], [], []>} : vector<64x128xf32>, vector<128x256xf32>, vector<64x256xf32> -> vector<64x256xf32>
    %7 = vector.shape_cast %6 : vector<64x256xf32> to vector<8x8x256xf32>
    %c0_5 = arith.constant 0 : index
    %c0_6 = arith.constant 0 : index
    %8 = vector.load %arg2[%c0_5, %c0_6] : memref<8x256xf32, #tpu.memory_space<vmem>>, vector<8x256xf32>
    %9 = vector.shape_cast %8 : vector<8x256xf32> to vector<1x8x256xf32>
    %10 = vector.broadcast %9 : vector<1x8x256xf32> to vector<8x8x256xf32>
    %11 = arith.addf %7, %10 : vector<8x8x256xf32>
    %c0_7 = arith.constant 0 : index
    %c0_8 = arith.constant 0 : index
    %c0_9 = arith.constant 0 : index
    %12 = vector.load %arg9[%c0_7, %c0_8, %c0_9] : memref<8x8x256xf32, #tpu.memory_space<vmem>>, vector<8x8x256xf32>
    tpu.vector_store %arg9[%c0_7, %c0_8, %c0_9], %11 {strides = array<i32>} : memref<8x8x256xf32, #tpu.memory_space<vmem>>, vector<8x8x256xf32>,
    %c0_10 = arith.constant 0 : index
    %c0_11 = arith.constant 0 : index
    %13 = vector.load %arg6[%c0_10, %c0_11] : memref<128x256xf32, #tpu.memory_space<vmem>>, vector<128x256xf32>
    %c0_12 = arith.constant 0 : index
    %c0_13 = arith.constant 0 : index
    %14 = vector.load %arg8[%c0_12, %c0_13] : memref<8x128xf32, #tpu.memory_space<vmem>>, vector<8x128xf32>
    %c0_i32_14 = arith.constant 0 : i32
    %15 = arith.index_cast %c0_i32_14 : i32 to index
    %c0_15 = arith.constant 0 : index
    %c0_16 = arith.constant 0 : index
    %16 = vector.load %arg9[%15, %c0_15, %c0_16] : memref<8x8x256xf32, #tpu.memory_space<vmem>>, vector<1x8x256xf32>
    %17 = vector.shape_cast %16 : vector<1x8x256xf32> to vector<8x256xf32>
    %cst_17 = arith.constant dense<0.000000e+00> : vector<8x256xf32>
    %18 = tpu.matmul %14, %13, %cst_17 {dimension_numbers = #tpu.dot_dimension_numbers<[1], [0], [0], [1], [0, 0, 1, 1], [], []>} : vector<8x128xf32>, vector<128x256xf32>, vector<8x256xf32> -> vector<8x256xf32>
    %19 = arith.addf %17, %18 : vector<8x256xf32>
    %20 = vector.extract_strided_slice %19 {offsets = [0, 0], sizes = [8, 128], strides = [1, 1]} : vector<8x256xf32> to vector<8x128xf32>
    %21 = math.tanh %20 : vector<8x128xf32>
    %22 = vector.extract_strided_slice %19 {offsets = [0, 128], sizes = [8, 128], strides = [1, 1]} : vector<8x256xf32> to vector<8x128xf32>
    %cst_18 = arith.constant dense<0xFF800000> : vector<8xf32>
    %23 = vector.multi_reduction <maximumf>, %22, %cst_18 [1] : vector<8x128xf32> to vector<8xf32>
    %24 = vector.shape_cast %23 : vector<8xf32> to vector<8x1xf32>
    %25 = vector.broadcast %24 : vector<8x1xf32> to vector<8x128xf32>
    %26 = arith.subf %22, %25 : vector<8x128xf32>
    %27 = math.exp %26 : vector<8x128xf32>
    %cst_19 = arith.constant dense<0.000000e+00> : vector<8xf32>
    %28 = vector.multi_reduction <add>, %27, %cst_19 [1] : vector<8x128xf32> to vector<8xf32>
    %29 = vector.shape_cast %28 : vector<8xf32> to vector<8x1xf32>
    %30 = math.log %29 : vector<8x1xf32>
    %31 = vector.broadcast %30 : vector<8x1xf32> to vector<8x128xf32>
    %32 = arith.subf %26, %31 : vector<8x128xf32>
    %33 = arith.index_cast %c0_i32_14 : i32 to index
    %c0_20 = arith.constant 0 : index
    %c0_21 = arith.constant 0 : index
    %34 = vector.load %arg7[%33, %c0_20, %c0_21] : memref<8x8x128xf32, #tpu.memory_space<vmem>>, vector<1x8x128xf32>
    %35 = vector.shape_cast %34 : vector<1x8x128xf32> to vector<8x128xf32>
    %36 = vector.shape_cast %32 : vector<8x128xf32> to vector<1x8x128xf32>
    tpu.vector_store %arg7[%33, %c0_20, %c0_21], %36 {strides = array<i32>} : memref<8x8x128xf32, #tpu.memory_space<vmem>>, vector<1x8x128xf32>,
    %c1_i32 = arith.constant 1 : i32
    %37 = arith.index_cast %c1_i32 : i32 to index
    %c0_22 = arith.constant 0 : index
    %c0_23 = arith.constant 0 : index
    %38 = vector.load %arg9[%37, %c0_22, %c0_23] : memref<8x8x256xf32, #tpu.memory_space<vmem>>, vector<1x8x256xf32>
    %39 = vector.shape_cast %38 : vector<1x8x256xf32> to vector<8x256xf32>
    %cst_24 = arith.constant dense<0.000000e+00> : vector<8x256xf32>
    %40 = tpu.matmul %21, %13, %cst_24 {dimension_numbers = #tpu.dot_dimension_numbers<[1], [0], [0], [1], [0, 0, 1, 1], [], []>} : vector<8x128xf32>, vector<128x256xf32>, vector<8x256xf32> -> vector<8x256xf32>
    %41 = arith.addf %39, %40 : vector<8x256xf32>
    %42 = vector.extract_strided_slice %41 {offsets = [0, 0], sizes = [8, 128], strides = [1, 1]} : vector<8x256xf32> to vector<8x128xf32>
    %43 = math.tanh %42 : vector<8x128xf32>
    %44 = vector.extract_strided_slice %41 {offsets = [0, 128], sizes = [8, 128], strides = [1, 1]} : vector<8x256xf32> to vector<8x128xf32>
    %cst_25 = arith.constant dense<0xFF800000> : vector<8xf32>
    %45 = vector.multi_reduction <maximumf>, %44, %cst_25 [1] : vector<8x128xf32> to vector<8xf32>
    %46 = vector.shape_cast %45 : vector<8xf32> to vector<8x1xf32>
    %47 = vector.broadcast %46 : vector<8x1xf32> to vector<8x128xf32>
    %48 = arith.subf %44, %47 : vector<8x128xf32>
    %49 = math.exp %48 : vector<8x128xf32>
    %cst_26 = arith.constant dense<0.000000e+00> : vector<8xf32>
    %50 = vector.multi_reduction <add>, %49, %cst_26 [1] : vector<8x128xf32> to vector<8xf32>
    %51 = vector.shape_cast %50 : vector<8xf32> to vector<8x1xf32>
    %52 = math.log %51 : vector<8x1xf32>
    %53 = vector.broadcast %52 : vector<8x1xf32> to vector<8x128xf32>
    %54 = arith.subf %48, %53 : vector<8x128xf32>
    %55 = arith.index_cast %c1_i32 : i32 to index
    %c0_27 = arith.constant 0 : index
    %c0_28 = arith.constant 0 : index
    %56 = vector.load %arg7[%55, %c0_27, %c0_28] : memref<8x8x128xf32, #tpu.memory_space<vmem>>, vector<1x8x128xf32>
    %57 = vector.shape_cast %56 : vector<1x8x128xf32> to vector<8x128xf32>
    %58 = vector.shape_cast %54 : vector<8x128xf32> to vector<1x8x128xf32>
    tpu.vector_store %arg7[%55, %c0_27, %c0_28], %58 {strides = array<i32>} : memref<8x8x128xf32, #tpu.memory_space<vmem>>, vector<1x8x128xf32>,
    %c2_i32 = arith.constant 2 : i32
    %59 = arith.index_cast %c2_i32 : i32 to index
    %c0_29 = arith.constant 0 : index
    %c0_30 = arith.constant 0 : index
    %60 = vector.load %arg9[%59, %c0_29, %c0_30] : memref<8x8x256xf32, #tpu.memory_space<vmem>>, vector<1x8x256xf32>
    %61 = vector.shape_cast %60 : vector<1x8x256xf32> to vector<8x256xf32>
    %cst_31 = arith.constant dense<0.000000e+00> : vector<8x256xf32>
    %62 = tpu.matmul %43, %13, %cst_31 {dimension_numbers = #tpu.dot_dimension_numbers<[1], [0], [0], [1], [0, 0, 1, 1], [], []>} : vector<8x128xf32>, vector<128x256xf32>, vector<8x256xf32> -> vector<8x256xf32>
    %63 = arith.addf %61, %62 : vector<8x256xf32>
    %64 = vector.extract_strided_slice %63 {offsets = [0, 0], sizes = [8, 128], strides = [1, 1]} : vector<8x256xf32> to vector<8x128xf32>
    %65 = math.tanh %64 : vector<8x128xf32>
    %66 = vector.extract_strided_slice %63 {offsets = [0, 128], sizes = [8, 128], strides = [1, 1]} : vector<8x256xf32> to vector<8x128xf32>
    %cst_32 = arith.constant dense<0xFF800000> : vector<8xf32>
    %67 = vector.multi_reduction <maximumf>, %66, %cst_32 [1] : vector<8x128xf32> to vector<8xf32>
    %68 = vector.shape_cast %67 : vector<8xf32> to vector<8x1xf32>
    %69 = vector.broadcast %68 : vector<8x1xf32> to vector<8x128xf32>
    %70 = arith.subf %66, %69 : vector<8x128xf32>
    %71 = math.exp %70 : vector<8x128xf32>
    %cst_33 = arith.constant dense<0.000000e+00> : vector<8xf32>
    %72 = vector.multi_reduction <add>, %71, %cst_33 [1] : vector<8x128xf32> to vector<8xf32>
    %73 = vector.shape_cast %72 : vector<8xf32> to vector<8x1xf32>
    %74 = math.log %73 : vector<8x1xf32>
    %75 = vector.broadcast %74 : vector<8x1xf32> to vector<8x128xf32>
    %76 = arith.subf %70, %75 : vector<8x128xf32>
    %77 = arith.index_cast %c2_i32 : i32 to index
    %c0_34 = arith.constant 0 : index
    %c0_35 = arith.constant 0 : index
    %78 = vector.load %arg7[%77, %c0_34, %c0_35] : memref<8x8x128xf32, #tpu.memory_space<vmem>>, vector<1x8x128xf32>
    %79 = vector.shape_cast %78 : vector<1x8x128xf32> to vector<8x128xf32>
    %80 = vector.shape_cast %76 : vector<8x128xf32> to vector<1x8x128xf32>
    tpu.vector_store %arg7[%77, %c0_34, %c0_35], %80 {strides = array<i32>} : memref<8x8x128xf32, #tpu.memory_space<vmem>>, vector<1x8x128xf32>,
    %c3_i32 = arith.constant 3 : i32
    %81 = arith.index_cast %c3_i32 : i32 to index
    %c0_36 = arith.constant 0 : index
    %c0_37 = arith.constant 0 : index
    %82 = vector.load %arg9[%81, %c0_36, %c0_37] : memref<8x8x256xf32, #tpu.memory_space<vmem>>, vector<1x8x256xf32>
    %83 = vector.shape_cast %82 : vector<1x8x256xf32> to vector<8x256xf32>
    %cst_38 = arith.constant dense<0.000000e+00> : vector<8x256xf32>
    %84 = tpu.matmul %65, %13, %cst_38 {dimension_numbers = #tpu.dot_dimension_numbers<[1], [0], [0], [1], [0, 0, 1, 1], [], []>} : vector<8x128xf32>, vector<128x256xf32>, vector<8x256xf32> -> vector<8x256xf32>
    %85 = arith.addf %83, %84 : vector<8x256xf32>
    %86 = vector.extract_strided_slice %85 {offsets = [0, 0], sizes = [8, 128], strides = [1, 1]} : vector<8x256xf32> to vector<8x128xf32>
    %87 = math.tanh %86 : vector<8x128xf32>
    %88 = vector.extract_strided_slice %85 {offsets = [0, 128], sizes = [8, 128], strides = [1, 1]} : vector<8x256xf32> to vector<8x128xf32>
    %cst_39 = arith.constant dense<0xFF800000> : vector<8xf32>
    %89 = vector.multi_reduction <maximumf>, %88, %cst_39 [1] : vector<8x128xf32> to vector<8xf32>
    %90 = vector.shape_cast %89 : vector<8xf32> to vector<8x1xf32>
    %91 = vector.broadcast %90 : vector<8x1xf32> to vector<8x128xf32>
    %92 = arith.subf %88, %91 : vector<8x128xf32>
    %93 = math.exp %92 : vector<8x128xf32>
    %cst_40 = arith.constant dense<0.000000e+00> : vector<8xf32>
    %94 = vector.multi_reduction <add>, %93, %cst_40 [1] : vector<8x128xf32> to vector<8xf32>
    %95 = vector.shape_cast %94 : vector<8xf32> to vector<8x1xf32>
    %96 = math.log %95 : vector<8x1xf32>
    %97 = vector.broadcast %96 : vector<8x1xf32> to vector<8x128xf32>
    %98 = arith.subf %92, %97 : vector<8x128xf32>
    %99 = arith.index_cast %c3_i32 : i32 to index
    %c0_41 = arith.constant 0 : index
    %c0_42 = arith.constant 0 : index
    %100 = vector.load %arg7[%99, %c0_41, %c0_42] : memref<8x8x128xf32, #tpu.memory_space<vmem>>, vector<1x8x128xf32>
    %101 = vector.shape_cast %100 : vector<1x8x128xf32> to vector<8x128xf32>
    %102 = vector.shape_cast %98 : vector<8x128xf32> to vector<1x8x128xf32>
    tpu.vector_store %arg7[%99, %c0_41, %c0_42], %102 {strides = array<i32>} : memref<8x8x128xf32, #tpu.memory_space<vmem>>, vector<1x8x128xf32>,
    %c4_i32 = arith.constant 4 : i32
    %103 = arith.index_cast %c4_i32 : i32 to index
    %c0_43 = arith.constant 0 : index
    %c0_44 = arith.constant 0 : index
    %104 = vector.load %arg9[%103, %c0_43, %c0_44] : memref<8x8x256xf32, #tpu.memory_space<vmem>>, vector<1x8x256xf32>
    %105 = vector.shape_cast %104 : vector<1x8x256xf32> to vector<8x256xf32>
    %cst_45 = arith.constant dense<0.000000e+00> : vector<8x256xf32>
    %106 = tpu.matmul %87, %13, %cst_45 {dimension_numbers = #tpu.dot_dimension_numbers<[1], [0], [0], [1], [0, 0, 1, 1], [], []>} : vector<8x128xf32>, vector<128x256xf32>, vector<8x256xf32> -> vector<8x256xf32>
    %107 = arith.addf %105, %106 : vector<8x256xf32>
    %108 = vector.extract_strided_slice %107 {offsets = [0, 0], sizes = [8, 128], strides = [1, 1]} : vector<8x256xf32> to vector<8x128xf32>
    %109 = math.tanh %108 : vector<8x128xf32>
    %110 = vector.extract_strided_slice %107 {offsets = [0, 128], sizes = [8, 128], strides = [1, 1]} : vector<8x256xf32> to vector<8x128xf32>
    %cst_46 = arith.constant dense<0xFF800000> : vector<8xf32>
    %111 = vector.multi_reduction <maximumf>, %110, %cst_46 [1] : vector<8x128xf32> to vector<8xf32>
    %112 = vector.shape_cast %111 : vector<8xf32> to vector<8x1xf32>
    %113 = vector.broadcast %112 : vector<8x1xf32> to vector<8x128xf32>
    %114 = arith.subf %110, %113 : vector<8x128xf32>
    %115 = math.exp %114 : vector<8x128xf32>
    %cst_47 = arith.constant dense<0.000000e+00> : vector<8xf32>
    %116 = vector.multi_reduction <add>, %115, %cst_47 [1] : vector<8x128xf32> to vector<8xf32>
    %117 = vector.shape_cast %116 : vector<8xf32> to vector<8x1xf32>
    %118 = math.log %117 : vector<8x1xf32>
    %119 = vector.broadcast %118 : vector<8x1xf32> to vector<8x128xf32>
    %120 = arith.subf %114, %119 : vector<8x128xf32>
    %121 = arith.index_cast %c4_i32 : i32 to index
    %c0_48 = arith.constant 0 : index
    %c0_49 = arith.constant 0 : index
    %122 = vector.load %arg7[%121, %c0_48, %c0_49] : memref<8x8x128xf32, #tpu.memory_space<vmem>>, vector<1x8x128xf32>
    %123 = vector.shape_cast %122 : vector<1x8x128xf32> to vector<8x128xf32>
    %124 = vector.shape_cast %120 : vector<8x128xf32> to vector<1x8x128xf32>
    tpu.vector_store %arg7[%121, %c0_48, %c0_49], %124 {strides = array<i32>} : memref<8x8x128xf32, #tpu.memory_space<vmem>>, vector<1x8x128xf32>,
    %c5_i32 = arith.constant 5 : i32
    %125 = arith.index_cast %c5_i32 : i32 to index
    %c0_50 = arith.constant 0 : index
    %c0_51 = arith.constant 0 : index
    %126 = vector.load %arg9[%125, %c0_50, %c0_51] : memref<8x8x256xf32, #tpu.memory_space<vmem>>, vector<1x8x256xf32>
    %127 = vector.shape_cast %126 : vector<1x8x256xf32> to vector<8x256xf32>
    %cst_52 = arith.constant dense<0.000000e+00> : vector<8x256xf32>
    %128 = tpu.matmul %109, %13, %cst_52 {dimension_numbers = #tpu.dot_dimension_numbers<[1], [0], [0], [1], [0, 0, 1, 1], [], []>} : vector<8x128xf32>, vector<128x256xf32>, vector<8x256xf32> -> vector<8x256xf32>
    %129 = arith.addf %127, %128 : vector<8x256xf32>
    %130 = vector.extract_strided_slice %129 {offsets = [0, 0], sizes = [8, 128], strides = [1, 1]} : vector<8x256xf32> to vector<8x128xf32>
    %131 = math.tanh %130 : vector<8x128xf32>
    %132 = vector.extract_strided_slice %129 {offsets = [0, 128], sizes = [8, 128], strides = [1, 1]} : vector<8x256xf32> to vector<8x128xf32>
    %cst_53 = arith.constant dense<0xFF800000> : vector<8xf32>
    %133 = vector.multi_reduction <maximumf>, %132, %cst_53 [1] : vector<8x128xf32> to vector<8xf32>
    %134 = vector.shape_cast %133 : vector<8xf32> to vector<8x1xf32>
    %135 = vector.broadcast %134 : vector<8x1xf32> to vector<8x128xf32>
    %136 = arith.subf %132, %135 : vector<8x128xf32>
    %137 = math.exp %136 : vector<8x128xf32>
    %cst_54 = arith.constant dense<0.000000e+00> : vector<8xf32>
    %138 = vector.multi_reduction <add>, %137, %cst_54 [1] : vector<8x128xf32> to vector<8xf32>
    %139 = vector.shape_cast %138 : vector<8xf32> to vector<8x1xf32>
    %140 = math.log %139 : vector<8x1xf32>
    %141 = vector.broadcast %140 : vector<8x1xf32> to vector<8x128xf32>
    %142 = arith.subf %136, %141 : vector<8x128xf32>
    %143 = arith.index_cast %c5_i32 : i32 to index
    %c0_55 = arith.constant 0 : index
    %c0_56 = arith.constant 0 : index
    %144 = vector.load %arg7[%143, %c0_55, %c0_56] : memref<8x8x128xf32, #tpu.memory_space<vmem>>, vector<1x8x128xf32>
    %145 = vector.shape_cast %144 : vector<1x8x128xf32> to vector<8x128xf32>
    %146 = vector.shape_cast %142 : vector<8x128xf32> to vector<1x8x128xf32>
    tpu.vector_store %arg7[%143, %c0_55, %c0_56], %146 {strides = array<i32>} : memref<8x8x128xf32, #tpu.memory_space<vmem>>, vector<1x8x128xf32>,
    %c6_i32 = arith.constant 6 : i32
    %147 = arith.index_cast %c6_i32 : i32 to index
    %c0_57 = arith.constant 0 : index
    %c0_58 = arith.constant 0 : index
    %148 = vector.load %arg9[%147, %c0_57, %c0_58] : memref<8x8x256xf32, #tpu.memory_space<vmem>>, vector<1x8x256xf32>
    %149 = vector.shape_cast %148 : vector<1x8x256xf32> to vector<8x256xf32>
    %cst_59 = arith.constant dense<0.000000e+00> : vector<8x256xf32>
    %150 = tpu.matmul %131, %13, %cst_59 {dimension_numbers = #tpu.dot_dimension_numbers<[1], [0], [0], [1], [0, 0, 1, 1], [], []>} : vector<8x128xf32>, vector<128x256xf32>, vector<8x256xf32> -> vector<8x256xf32>
    %151 = arith.addf %149, %150 : vector<8x256xf32>
    %152 = vector.extract_strided_slice %151 {offsets = [0, 0], sizes = [8, 128], strides = [1, 1]} : vector<8x256xf32> to vector<8x128xf32>
    %153 = math.tanh %152 : vector<8x128xf32>
    %154 = vector.extract_strided_slice %151 {offsets = [0, 128], sizes = [8, 128], strides = [1, 1]} : vector<8x256xf32> to vector<8x128xf32>
    %cst_60 = arith.constant dense<0xFF800000> : vector<8xf32>
    %155 = vector.multi_reduction <maximumf>, %154, %cst_60 [1] : vector<8x128xf32> to vector<8xf32>
    %156 = vector.shape_cast %155 : vector<8xf32> to vector<8x1xf32>
    %157 = vector.broadcast %156 : vector<8x1xf32> to vector<8x128xf32>
    %158 = arith.subf %154, %157 : vector<8x128xf32>
    %159 = math.exp %158 : vector<8x128xf32>
    %cst_61 = arith.constant dense<0.000000e+00> : vector<8xf32>
    %160 = vector.multi_reduction <add>, %159, %cst_61 [1] : vector<8x128xf32> to vector<8xf32>
    %161 = vector.shape_cast %160 : vector<8xf32> to vector<8x1xf32>
    %162 = math.log %161 : vector<8x1xf32>
    %163 = vector.broadcast %162 : vector<8x1xf32> to vector<8x128xf32>
    %164 = arith.subf %158, %163 : vector<8x128xf32>
    %165 = arith.index_cast %c6_i32 : i32 to index
    %c0_62 = arith.constant 0 : index
    %c0_63 = arith.constant 0 : index
    %166 = vector.load %arg7[%165, %c0_62, %c0_63] : memref<8x8x128xf32, #tpu.memory_space<vmem>>, vector<1x8x128xf32>
    %167 = vector.shape_cast %166 : vector<1x8x128xf32> to vector<8x128xf32>
    %168 = vector.shape_cast %164 : vector<8x128xf32> to vector<1x8x128xf32>
    tpu.vector_store %arg7[%165, %c0_62, %c0_63], %168 {strides = array<i32>} : memref<8x8x128xf32, #tpu.memory_space<vmem>>, vector<1x8x128xf32>,
    %c7_i32 = arith.constant 7 : i32
    %169 = arith.index_cast %c7_i32 : i32 to index
    %c0_64 = arith.constant 0 : index
    %c0_65 = arith.constant 0 : index
    %170 = vector.load %arg9[%169, %c0_64, %c0_65] : memref<8x8x256xf32, #tpu.memory_space<vmem>>, vector<1x8x256xf32>
    %171 = vector.shape_cast %170 : vector<1x8x256xf32> to vector<8x256xf32>
    %cst_66 = arith.constant dense<0.000000e+00> : vector<8x256xf32>
    %172 = tpu.matmul %153, %13, %cst_66 {dimension_numbers = #tpu.dot_dimension_numbers<[1], [0], [0], [1], [0, 0, 1, 1], [], []>} : vector<8x128xf32>, vector<128x256xf32>, vector<8x256xf32> -> vector<8x256xf32>
    %173 = arith.addf %171, %172 : vector<8x256xf32>
    %174 = vector.extract_strided_slice %173 {offsets = [0, 0], sizes = [8, 128], strides = [1, 1]} : vector<8x256xf32> to vector<8x128xf32>
    %175 = math.tanh %174 : vector<8x128xf32>
    %176 = vector.extract_strided_slice %173 {offsets = [0, 128], sizes = [8, 128], strides = [1, 1]} : vector<8x256xf32> to vector<8x128xf32>
    %cst_67 = arith.constant dense<0xFF800000> : vector<8xf32>
    %177 = vector.multi_reduction <maximumf>, %176, %cst_67 [1] : vector<8x128xf32> to vector<8xf32>
    %178 = vector.shape_cast %177 : vector<8xf32> to vector<8x1xf32>
    %179 = vector.broadcast %178 : vector<8x1xf32> to vector<8x128xf32>
    %180 = arith.subf %176, %179 : vector<8x128xf32>
    %181 = math.exp %180 : vector<8x128xf32>
    %cst_68 = arith.constant dense<0.000000e+00> : vector<8xf32>
    %182 = vector.multi_reduction <add>, %181, %cst_68 [1] : vector<8x128xf32> to vector<8xf32>
    %183 = vector.shape_cast %182 : vector<8xf32> to vector<8x1xf32>
    %184 = math.log %183 : vector<8x1xf32>
    %185 = vector.broadcast %184 : vector<8x1xf32> to vector<8x128xf32>
    %186 = arith.subf %180, %185 : vector<8x128xf32>
    %187 = arith.index_cast %c7_i32 : i32 to index
    %c0_69 = arith.constant 0 : index
    %c0_70 = arith.constant 0 : index
    %188 = vector.load %arg7[%187, %c0_69, %c0_70] : memref<8x8x128xf32, #tpu.memory_space<vmem>>, vector<1x8x128xf32>
    %189 = vector.shape_cast %188 : vector<1x8x128xf32> to vector<8x128xf32>
    %190 = vector.shape_cast %186 : vector<8x128xf32> to vector<1x8x128xf32>
    tpu.vector_store %arg7[%187, %c0_69, %c0_70], %190 {strides = array<i32>} : memref<8x8x128xf32, #tpu.memory_space<vmem>>, vector<1x8x128xf32>,
    %c8_i32 = arith.constant 8 : i32
    %c0_71 = arith.constant 0 : index
    %c0_72 = arith.constant 0 : index
    %191 = vector.load %arg8[%c0_71, %c0_72] : memref<8x128xf32, #tpu.memory_space<vmem>>, vector<8x128xf32>
    tpu.vector_store %arg8[%c0_71, %c0_72], %175 {strides = array<i32>} : memref<8x128xf32, #tpu.memory_space<vmem>>, vector<8x128xf32>,
    return
  }
  func.func @transform_0(%arg0: i32, %arg1: i32) -> (i32, i32) {
    %c0_i32 = arith.constant 0 : i32
    %c0_i32_0 = arith.constant 0 : i32
    return %arg0, %c0_i32 : i32, i32
  }
  func.func @transform_1(%arg0: i32, %arg1: i32) -> (i32, i32) {
    %c0_i32 = arith.constant 0 : i32
    %c0_i32_0 = arith.constant 0 : i32
    return %arg0, %c0_i32 : i32, i32
  }
  func.func @transform_2(%arg0: i32, %arg1: i32) -> (i32, i32, i32) {
    %c0_i32 = arith.constant 0 : i32
    %c0_i32_0 = arith.constant 0 : i32
    return %arg1, %arg0, %c0_i32 : i32, i32, i32
  }
  func.func @transform_3(%arg0: i32, %arg1: i32) -> (i32, i32) {
    %c0_i32 = arith.constant 0 : i32
    %c0_i32_0 = arith.constant 0 : i32
    %c0_i32_1 = arith.constant 0 : i32
    return %c0_i32, %c0_i32_0 : i32, i32
  }
  func.func @transform_4(%arg0: i32, %arg1: i32) -> (i32, i32) {
    %c0_i32 = arith.constant 0 : i32
    %c0_i32_0 = arith.constant 0 : i32
    %c0_i32_1 = arith.constant 0 : i32
    return %c0_i32, %c0_i32_0 : i32, i32
  }
  func.func @transform_5(%arg0: i32, %arg1: i32) -> (i32, i32, i32) {
    %c0_i32 = arith.constant 0 : i32
    %c0_i32_0 = arith.constant 0 : i32
    return %arg1, %arg0, %c0_i32 : i32, i32, i32
  }
  func.func @transform_6(%arg0: i32, %arg1: i32) -> (i32, i32) {
    %c0_i32 = arith.constant 0 : i32
    %c0_i32_0 = arith.constant 0 : i32
    return %arg0, %c0_i32 : i32, i32
  }
}

</mosaic_0001>

<llo_original>
// kernel: tpu_custom_call.1
$region0: #{tpu_custom_call.1}
  #allocation0 [shape = 'u32[]', space=smem, size = 0x4, offset = 0x4, fixed_abs, tag = 'smem constant byte address 0x4 - core index']
  #allocation1 [shape = 'u32[72,128]{1,0:T(1,128)}', space=vmem, size = 0x9000, scoped, tag = 'internal scratch']
  #allocation2 [shape = 'f32[8,8,256]{2,1,0:T(8,128)}', space=vmem, size = 0x10000, scoped, tag = 'scratch operand']
  %s0 = inlined_call_operand.hbm [shape: f32[8,256], index: 0, kind: input, shape index: {}]
  %s1 = inlined_call_operand.hbm [shape: f32[8,128], index: 1, kind: input, shape index: {}]
  %s2 = inlined_call_operand.hbm [shape: f32[8,8,128], index: 2, kind: input, shape index: {}]
  %s3 = inlined_call_operand.hbm [shape: f32[128,256], index: 3, kind: input, shape index: {}]
  %s4 = inlined_call_operand.hbm [shape: f32[128,256], index: 4, kind: input, shape index: {}]
  %s5 = inlined_call_operand.hbm [shape: f32[8,8,128], index: 5, kind: output, shape index: {0}]
  %s6 = inlined_call_operand.hbm [shape: f32[8,128], index: 6, kind: output, shape index: {1}]
  %7 = xla_tuple %s5, %s6
  %s8 = sld [smem:[#allocation0]]
  $region62: #{tpu_custom_call.1} parent=0
    _
  %s10 = ssub.s32 1, %s8
  %s11 = scalar_select 0, %s10, %s8
  $region1: #{tpu_custom_call.1} parent=0
    #allocation3 [shape = 'u8[8192]{0}', space=vmem, size = 0x2000, scoped, tag = 'input window, operand 0, single buffered']
    #allocation4 [shape = 's32[1]{0}', space=sflag, size = 0x4, scoped, tag = 'scoped memory for tpu_custom_call.1']
    #allocation5 [shape = 's32[1]{0}', space=sflag, size = 0x4, scoped, tag = 'scoped memory for tpu_custom_call.1']
    #allocation6 [shape = 'u8[4096]{0}', space=vmem, size = 0x1000, scoped, tag = 'input window, operand 1, single buffered']
    #allocation7 [shape = 's32[1]{0}', space=sflag, size = 0x4, scoped, tag = 'scoped memory for tpu_custom_call.1']
    #allocation8 [shape = 'u8[32768]{0}', space=vmem, size = 0x8000, scoped, tag = 'input window, operand 2, single buffered']
    #allocation9 [shape = 'u8[131072]{0}', space=vmem, size = 0x20000, scoped, tag = 'input window, operand 3, single buffered']
    #allocation10 [shape = 's32[1]{0}', space=sflag, size = 0x4, scoped, tag = 'scoped memory for tpu_custom_call.1']
    #allocation11 [shape = 'u8[131072]{0}', space=vmem, size = 0x20000, scoped, tag = 'input window, operand 4, single buffered']
    #allocation12 [shape = 'u8[32768]{0}', space=vmem, size = 0x8000, scoped, tag = 'output window, operand 0, single buffered']
    #allocation13 [shape = 'u8[4096]{0}', space=vmem, size = 0x1000, scoped, tag = 'output window, operand 1, single buffered']
    #allocation14 [shape = 's32[1]{0}', space=sflag, size = 0x4, scoped, tag = 'scoped memory for tpu_custom_call.1']
    %12 = vsyncpa [#allocation4], 0
    %13 = vsyncpa [#allocation7], 0
    %14 = vsyncpa [#allocation10], 0
    %15 = vsyncpa [#allocation5], 0
    %16 = vsyncpa [#allocation14], 0
    // Predicated region
    $region2: #{tpu_custom_call.1} parent=1 // pred_check
      _
    $region3: #{tpu_custom_call.1} parent=1 // pred_check_branch
      %18 = sbr.rel (0) target = $region5
    $region4: #{tpu_custom_call.1} parent=1 // pred_region
      %20 = vsyncadd [#allocation4], 0
      %s22 = sshll.u32 %s0, 4
      %s23 = int_to_ptr.hbm [resolvable:$true] %s22
      %s24 = sshll.u32 [#allocation3], 4
      %s25 = int_to_ptr.vmem [resolvable:$true] %s24
      %27 = dma.hbm_to_vmem [thread:$0]  %s23, 256, %s25, [#allocation4]
    $region5: #{tpu_custom_call.1} parent=1 // pred_fallthru
      _
    // Predicated region
    $region6: #{tpu_custom_call.1} parent=1 // pred_check
      _
    $region7: #{tpu_custom_call.1} parent=1 // pred_check_branch
      %29 = sbr.rel (0) target = $region9
    $region8: #{tpu_custom_call.1} parent=1 // pred_region
      %31 = vsyncadd [#allocation7], 0
      %s33 = sshll.u32 %s1, 4
      %s34 = int_to_ptr.hbm [resolvable:$true] %s33
      %s35 = sshll.u32 [#allocation6], 4
      %s36 = int_to_ptr.vmem [resolvable:$true] %s35
      %38 = dma.hbm_to_vmem [thread:$0]  %s34, 128, %s36, [#allocation7]
    $region9: #{tpu_custom_call.1} parent=1 // pred_fallthru
      _
    // Predicated region
    $region10: #{tpu_custom_call.1} parent=1 // pred_check
      _
    $region11: #{tpu_custom_call.1} parent=1 // pred_check_branch
      %40 = sbr.rel (0) target = $region13
    $region12: #{tpu_custom_call.1} parent=1 // pred_region
      %42 = vsyncadd [#allocation7], 0
      %s43 = sshll.u32 %s2, 4
      %s44 = int_to_ptr.hbm [resolvable:$true] %s43
      %s45 = sshll.u32 [#allocation8], 4
      %s46 = int_to_ptr.vmem [resolvable:$true] %s45
      %51 = dma.hbm_to_vmem [thread:$0]  %s44, 1024, %s46, [#allocation7], 128, 128, 8
    $region13: #{tpu_custom_call.1} parent=1 // pred_fallthru
      _
    // Predicated region
    $region14: #{tpu_custom_call.1} parent=1 // pred_check
      _
    $region15: #{tpu_custom_call.1} parent=1 // pred_check_branch
      %53 = sbr.rel (0) target = $region17
    $region16: #{tpu_custom_call.1} parent=1 // pred_region
      %55 = vsyncadd [#allocation10], 0
      %s56 = sshll.u32 %s3, 4
      %s57 = int_to_ptr.hbm [resolvable:$true] %s56
      %s58 = sshll.u32 [#allocation9], 4
      %s59 = int_to_ptr.vmem [resolvable:$true] %s58
      %64 = dma.hbm_to_vmem [thread:$0]  %s57, 4096, %s59, [#allocation10], 256, 256, 16
    $region17: #{tpu_custom_call.1} parent=1 // pred_fallthru
      _
    // Predicated region
    $region18: #{tpu_custom_call.1} parent=1 // pred_check
      _
    $region19: #{tpu_custom_call.1} parent=1 // pred_check_branch
      %66 = sbr.rel (0) target = $region21
    $region20: #{tpu_custom_call.1} parent=1 // pred_region
      %68 = vsyncadd [#allocation10], 0
      %s69 = sshll.u32 %s4, 4
      %s70 = int_to_ptr.hbm [resolvable:$true] %s69
      %s71 = sshll.u32 [#allocation11], 4
      %s72 = int_to_ptr.vmem [resolvable:$true] %s71
      %77 = dma.hbm_to_vmem [thread:$0]  %s70, 4096, %s72, [#allocation10], 256, 256, 16
    $region21: #{tpu_custom_call.1} parent=1 // pred_fallthru
      _
    // Predicated region
    $region22: #{tpu_custom_call.1} parent=1 // pred_check
      _
    $region23: #{tpu_custom_call.1} parent=1 // pred_check_branch
      %79 = sbr.rel (0) target = $region25
    $region24: #{tpu_custom_call.1} parent=1 // pred_region
      %81 = dma.done [#allocation4], 256
    $region25: #{tpu_custom_call.1} parent=1 // pred_fallthru
      _
    // Predicated region
    $region26: #{tpu_custom_call.1} parent=1 // pred_check
      _
    $region27: #{tpu_custom_call.1} parent=1 // pred_check_branch
      %83 = sbr.rel (0) target = $region29
    $region28: #{tpu_custom_call.1} parent=1 // pred_region
      %85 = dma.done [#allocation7], 128
    $region29: #{tpu_custom_call.1} parent=1 // pred_fallthru
      _
    // Predicated region
    $region30: #{tpu_custom_call.1} parent=1 // pred_check
      _
    $region31: #{tpu_custom_call.1} parent=1 // pred_check_branch
      %87 = sbr.rel (0) target = $region33
    $region32: #{tpu_custom_call.1} parent=1 // pred_region
      %89 = dma.done [#allocation7], 1024
    $region33: #{tpu_custom_call.1} parent=1 // pred_fallthru
      _
    // Predicated region
    $region34: #{tpu_custom_call.1} parent=1 // pred_check
      _
    $region35: #{tpu_custom_call.1} parent=1 // pred_check_branch
      %91 = sbr.rel (0) target = $region37
    $region36: #{tpu_custom_call.1} parent=1 // pred_region
      %93 = dma.done [#allocation10], 4096
    $region37: #{tpu_custom_call.1} parent=1 // pred_fallthru
      _
    // Predicated region
    $region38: #{tpu_custom_call.1} parent=1 // pred_check
      _
    $region39: #{tpu_custom_call.1} parent=1 // pred_check_branch
      %95 = sbr.rel (0) target = $region41
    $region40: #{tpu_custom_call.1} parent=1 // pred_region
      %97 = dma.done [#allocation10], 4096
    $region41: #{tpu_custom_call.1} parent=1 // pred_fallthru
      _
    %p98 = scmp.eq.s32.totalorder 0, 0
    // Predicated region
    $region42: #{tpu_custom_call.1} parent=1 // pred_check
      %p99 = pneg %p98
    $region43: #{tpu_custom_call.1} parent=1 // pred_check_branch
      %101 = sbr.rel (%p99) target = $region45
    $region44: #{tpu_custom_call.1} parent=1 // pred_region
      %v102 = vld [vmem:[#allocation6] sm:$0xff]
      %103 = vst [vmem:[#allocation13] sm:$0xff] %v102
    $region45: #{tpu_custom_call.1} parent=1 // pred_fallthru
      _
    %v104 = vld [vmem:[#allocation8] sm:$0xff]
    %v105 = vld [vmem:[#allocation8 + $0x8] sm:$0xff]
    %v106 = vld [vmem:[#allocation8 + $0x10] sm:$0xff]
    %v107 = vld [vmem:[#allocation8 + $0x18] sm:$0xff]
    %v108 = vld [vmem:[#allocation8 + $0x20] sm:$0xff]
    %v109 = vld [vmem:[#allocation8 + $0x28] sm:$0xff]
    %v110 = vld [vmem:[#allocation8 + $0x30] sm:$0xff]
    %v111 = vld [vmem:[#allocation8 + $0x38] sm:$0xff]
    %v112 = vld [vmem:[#allocation9] sm:$0xff]
    %v113 = vld [vmem:[#allocation9 + $0x8] sm:$0xff]
    %v114 = vld [vmem:[#allocation9 + $0x10] sm:$0xff]
    %v115 = vld [vmem:[#allocation9 + $0x18] sm:$0xff]
    %v116 = vld [vmem:[#allocation9 + $0x20] sm:$0xff]
    %v117 = vld [vmem:[#allocation9 + $0x28] sm:$0xff]
    %v118 = vld [vmem:[#allocation9 + $0x30] sm:$0xff]
    %v119 = vld [vmem:[#allocation9 + $0x38] sm:$0xff]
    %v120 = vld [vmem:[#allocation9 + $0x40] sm:$0xff]
    %v121 = vld [vmem:[#allocation9 + $0x48] sm:$0xff]
    %v122 = vld [vmem:[#allocation9 + $0x50] sm:$0xff]
    %v123 = vld [vmem:[#allocation9 + $0x58] sm:$0xff]
    %v124 = vld [vmem:[#allocation9 + $0x60] sm:$0xff]
    %v125 = vld [vmem:[#allocation9 + $0x68] sm:$0xff]
    %v126 = vld [vmem:[#allocation9 + $0x70] sm:$0xff]
    %v127 = vld [vmem:[#allocation9 + $0x78] sm:$0xff]
    %v128 = vld [vmem:[#allocation9 + $0x80] sm:$0xff]
    %v129 = vld [vmem:[#allocation9 + $0x88] sm:$0xff]
    %v130 = vld [vmem:[#allocation9 + $0x90] sm:$0xff]
    %v131 = vld [vmem:[#allocation9 + $0x98] sm:$0xff]
    %v132 = vld [vmem:[#allocation9 + $0xa0] sm:$0xff]
    %v133 = vld [vmem:[#allocation9 + $0xa8] sm:$0xff]
    %v134 = vld [vmem:[#allocation9 + $0xb0] sm:$0xff]
    %v135 = vld [vmem:[#allocation9 + $0xb8] sm:$0xff]
    %v136 = vld [vmem:[#allocation9 + $0xc0] sm:$0xff]
    %v137 = vld [vmem:[#allocation9 + $0xc8] sm:$0xff]
    %v138 = vld [vmem:[#allocation9 + $0xd0] sm:$0xff]
    %v139 = vld [vmem:[#allocation9 + $0xd8] sm:$0xff]
    %v140 = vld [vmem:[#allocation9 + $0xe0] sm:$0xff]
    %v141 = vld [vmem:[#allocation9 + $0xe8] sm:$0xff]
    %v142 = vld [vmem:[#allocation9 + $0xf0] sm:$0xff]
    %v143 = vld [vmem:[#allocation9 + $0xf8] sm:$0xff]
    %144 = vmatpush.msra.mxu0 %v142
    %145 = vmatpush.msra.mxu0 %v140
    %146 = vmatpush.msra.mxu0 %v138
    %147 = vmatpush.msra.mxu0 %v136
    %148 = vmatpush.msra.mxu0 %v134
    %149 = vmatpush.msra.mxu0 %v132
    %150 = vmatpush.msra.mxu0 %v130
    %151 = vmatpush.msra.mxu0 %v128
    %152 = vmatpush.msra.mxu0 %v126
    %153 = vmatpush.msra.mxu0 %v124
    %154 = vmatpush.msra.mxu0 %v122
    %155 = vmatpush.msra.mxu0 %v120
    %156 = vmatpush.msra.mxu0 %v118
    %157 = vmatpush.msra.mxu0 %v116
    %158 = vmatpush.msra.mxu0 %v114
    %159 = vmatpush.msra.mxu0 %v112
    %160 = vmatmul.f32.gmra.mxu0 %v104
    %v161 = vpop.f32.mrf.mxu0
    %v162 = vadd.f32 0.0, %v161
    %163 = vmatmul.f32.gmra.mxu0 %v105
    %v164 = vpop.f32.mrf.mxu0
    %v165 = vadd.f32 0.0, %v164
    %166 = vmatmul.f32.gmra.mxu0 %v106
    %v167 = vpop.f32.mrf.mxu0
    %v168 = vadd.f32 0.0, %v167
    %169 = vmatmul.f32.gmra.mxu0 %v107
    %v170 = vpop.f32.mrf.mxu0
    %v171 = vadd.f32 0.0, %v170
    %172 = vmatmul.f32.gmra.mxu0 %v108
    %v173 = vpop.f32.mrf.mxu0
    %v174 = vadd.f32 0.0, %v173
    %175 = vmatmul.f32.gmra.mxu0 %v109
    %v176 = vpop.f32.mrf.mxu0
    %v177 = vadd.f32 0.0, %v176
    %178 = vmatmul.f32.gmra.mxu0 %v110
    %v179 = vpop.f32.mrf.mxu0
    %v180 = vadd.f32 0.0, %v179
    %181 = vmatmul.f32.gmra.mxu0 %v111
    %v182 = vpop.f32.mrf.mxu0
    %v183 = vadd.f32 0.0, %v182
    %184 = vdwg.mxu0
    %185 = vmatpush.msra.mxu0 %v143
    %186 = vmatpush.msra.mxu0 %v141
    %187 = vmatpush.msra.mxu0 %v139
    %188 = vmatpush.msra.mxu0 %v137
    %189 = vmatpush.msra.mxu0 %v135
    %190 = vmatpush.msra.mxu0 %v133
    %191 = vmatpush.msra.mxu0 %v131
    %192 = vmatpush.msra.mxu0 %v129
    %193 = vmatpush.msra.mxu0 %v127
    %194 = vmatpush.msra.mxu0 %v125
    %195 = vmatpush.msra.mxu0 %v123
    %196 = vmatpush.msra.mxu0 %v121
    %197 = vmatpush.msra.mxu0 %v119
    %198 = vmatpush.msra.mxu0 %v117
    %199 = vmatpush.msra.mxu0 %v115
    %200 = vmatpush.msra.mxu0 %v113
    %201 = vmatmul.f32.gmra.mxu0 %v104
    %v202 = vpop.f32.mrf.mxu0
    %v203 = vadd.f32 0.0, %v202
    %204 = vmatmul.f32.gmra.mxu0 %v105
    %v205 = vpop.f32.mrf.mxu0
    %v206 = vadd.f32 0.0, %v205
    %207 = vmatmul.f32.gmra.mxu0 %v106
    %v208 = vpop.f32.mrf.mxu0
    %v209 = vadd.f32 0.0, %v208
    %210 = vmatmul.f32.gmra.mxu0 %v107
    %v211 = vpop.f32.mrf.mxu0
    %v212 = vadd.f32 0.0, %v211
    %213 = vmatmul.f32.gmra.mxu0 %v108
    %v214 = vpop.f32.mrf.mxu0
    %v215 = vadd.f32 0.0, %v214
    %216 = vmatmul.f32.gmra.mxu0 %v109
    %v217 = vpop.f32.mrf.mxu0
    %v218 = vadd.f32 0.0, %v217
    %219 = vmatmul.f32.gmra.mxu0 %v110
    %v220 = vpop.f32.mrf.mxu0
    %v221 = vadd.f32 0.0, %v220
    %222 = vmatmul.f32.gmra.mxu0 %v111
    %v223 = vpop.f32.mrf.mxu0
    %v224 = vadd.f32 0.0, %v223
    %225 = vdwg.mxu0
    %v226 = vld [vmem:[#allocation3] sm:$0xff]
    %v227 = vld [vmem:[#allocation3 + $0x8] sm:$0xff]
    %v228 = vadd.f32 %v162, %v226
    %v229 = vadd.f32 %v203, %v227
    %v230 = vadd.f32 %v165, %v226
    %v231 = vadd.f32 %v206, %v227
    %v232 = vadd.f32 %v168, %v226
    %v233 = vadd.f32 %v209, %v227
    %v234 = vadd.f32 %v171, %v226
    %v235 = vadd.f32 %v212, %v227
    %v236 = vadd.f32 %v174, %v226
    %v237 = vadd.f32 %v215, %v227
    %v238 = vadd.f32 %v177, %v226
    %v239 = vadd.f32 %v218, %v227
    %v240 = vadd.f32 %v180, %v226
    %v241 = vadd.f32 %v221, %v227
    %v242 = vadd.f32 %v183, %v226
    %v243 = vadd.f32 %v224, %v227
    %244 = vst [vmem:[#allocation2] sm:$0xff] %v228
    %245 = vst [vmem:[#allocation2 + $0x8] sm:$0xff] %v229
    %246 = vst [vmem:[#allocation2 + $0x10] sm:$0xff] %v230
    %247 = vst [vmem:[#allocation2 + $0x18] sm:$0xff] %v231
    %248 = vst [vmem:[#allocation2 + $0x20] sm:$0xff] %v232
    %249 = vst [vmem:[#allocation2 + $0x28] sm:$0xff] %v233
    %250 = vst [vmem:[#allocation2 + $0x30] sm:$0xff] %v234
    %251 = vst [vmem:[#allocation2 + $0x38] sm:$0xff] %v235
    %252 = vst [vmem:[#allocation2 + $0x40] sm:$0xff] %v236
    %253 = vst [vmem:[#allocation2 + $0x48] sm:$0xff] %v237
    %254 = vst [vmem:[#allocation2 + $0x50] sm:$0xff] %v238
    %255 = vst [vmem:[#allocation2 + $0x58] sm:$0xff] %v239
    %256 = vst [vmem:[#allocation2 + $0x60] sm:$0xff] %v240
    %257 = vst [vmem:[#allocation2 + $0x68] sm:$0xff] %v241
    %258 = vst [vmem:[#allocation2 + $0x70] sm:$0xff] %v242
    %259 = vst [vmem:[#allocation2 + $0x78] sm:$0xff] %v243
    %v260 = vld [vmem:[#allocation11] sm:$0xff]
    %v261 = vld [vmem:[#allocation11 + $0x8] sm:$0xff]
    %v262 = vld [vmem:[#allocation11 + $0x10] sm:$0xff]
    %v263 = vld [vmem:[#allocation11 + $0x18] sm:$0xff]
    %v264 = vld [vmem:[#allocation11 + $0x20] sm:$0xff]
    %v265 = vld [vmem:[#allocation11 + $0x28] sm:$0xff]
    %v266 = vld [vmem:[#allocation11 + $0x30] sm:$0xff]
    %v267 = vld [vmem:[#allocation11 + $0x38] sm:$0xff]
    %v268 = vld [vmem:[#allocation11 + $0x40] sm:$0xff]
    %v269 = vld [vmem:[#allocation11 + $0x48] sm:$0xff]
    %v270 = vld [vmem:[#allocation11 + $0x50] sm:$0xff]
    %v271 = vld [vmem:[#allocation11 + $0x58] sm:$0xff]
    %v272 = vld [vmem:[#allocation11 + $0x60] sm:$0xff]
    %v273 = vld [vmem:[#allocation11 + $0x68] sm:$0xff]
    %v274 = vld [vmem:[#allocation11 + $0x70] sm:$0xff]
    %v275 = vld [vmem:[#allocation11 + $0x78] sm:$0xff]
    %v276 = vld [vmem:[#allocation11 + $0x80] sm:$0xff]
    %v277 = vld [vmem:[#allocation11 + $0x88] sm:$0xff]
    %v278 = vld [vmem:[#allocation11 + $0x90] sm:$0xff]
    %v279 = vld [vmem:[#allocation11 + $0x98] sm:$0xff]
    %v280 = vld [vmem:[#allocation11 + $0xa0] sm:$0xff]
    %v281 = vld [vmem:[#allocation11 + $0xa8] sm:$0xff]
    %v282 = vld [vmem:[#allocation11 + $0xb0] sm:$0xff]
    %v283 = vld [vmem:[#allocation11 + $0xb8] sm:$0xff]
    %v284 = vld [vmem:[#allocation11 + $0xc0] sm:$0xff]
    %v285 = vld [vmem:[#allocation11 + $0xc8] sm:$0xff]
    %v286 = vld [vmem:[#allocation11 + $0xd0] sm:$0xff]
    %v287 = vld [vmem:[#allocation11 + $0xd8] sm:$0xff]
    %v288 = vld [vmem:[#allocation11 + $0xe0] sm:$0xff]
    %v289 = vld [vmem:[#allocation11 + $0xe8] sm:$0xff]
    %v290 = vld [vmem:[#allocation11 + $0xf0] sm:$0xff]
    %v291 = vld [vmem:[#allocation11 + $0xf8] sm:$0xff]
    %v292 = vld [vmem:[#allocation13] sm:$0xff]
    %v293 = vld [vmem:[#allocation2] sm:$0xff]
    %v294 = vld [vmem:[#allocation2 + $0x8] sm:$0xff]
    %295 = vmatpush.msra.mxu0 %v290
    %296 = vmatpush.msra.mxu0 %v288
    %297 = vmatpush.msra.mxu0 %v286
    %298 = vmatpush.msra.mxu0 %v284
    %299 = vmatpush.msra.mxu0 %v282
    %300 = vmatpush.msra.mxu0 %v280
    %301 = vmatpush.msra.mxu0 %v278
    %302 = vmatpush.msra.mxu0 %v276
    %303 = vmatpush.msra.mxu0 %v274
    %304 = vmatpush.msra.mxu0 %v272
    %305 = vmatpush.msra.mxu0 %v270
    %306 = vmatpush.msra.mxu0 %v268
    %307 = vmatpush.msra.mxu0 %v266
    %308 = vmatpush.msra.mxu0 %v264
    %309 = vmatpush.msra.mxu0 %v262
    %310 = vmatpush.msra.mxu0 %v260
    %311 = vmatmul.f32.gmra.mxu0 %v292
    %v312 = vpop.f32.mrf.mxu0
    %v313 = vadd.f32 0.0, %v312
    %314 = vdwg.mxu0
    %315 = vmatpush.msra.mxu0 %v291
    %316 = vmatpush.msra.mxu0 %v289
    %317 = vmatpush.msra.mxu0 %v287
    %318 = vmatpush.msra.mxu0 %v285
    %319 = vmatpush.msra.mxu0 %v283
    %320 = vmatpush.msra.mxu0 %v281
    %321 = vmatpush.msra.mxu0 %v279
    %322 = vmatpush.msra.mxu0 %v277
    %323 = vmatpush.msra.mxu0 %v275
    %324 = vmatpush.msra.mxu0 %v273
    %325 = vmatpush.msra.mxu0 %v271
    %326 = vmatpush.msra.mxu0 %v269
    %327 = vmatpush.msra.mxu0 %v267
    %328 = vmatpush.msra.mxu0 %v265
    %329 = vmatpush.msra.mxu0 %v263
    %330 = vmatpush.msra.mxu0 %v261
    %331 = vmatmul.f32.gmra.mxu0 %v292
    %v332 = vpop.f32.mrf.mxu0
    %v333 = vadd.f32 0.0, %v332
    %334 = vdwg.mxu0
    %v335 = vadd.f32 %v293, %v313
    %v336 = vadd.f32 %v294, %v333
    %v337 = vtanh.pop %v335
    %338 = vmax.xlane.f32.xlu0 %v336
    %v339 = vpop.xlane.xlu0 %338
    %v340 = vsub.f32 %v336, %v339
    %v341 = vmul.f32 %v340, 1.442695
    %v342 = vpow.pop %v341
    %343 = vadd.xlane.f32.xlu0 %v342
    %v344 = vpop.xlane.xlu0 %343
    %v345 = vlog2.pop %v344
    %v346 = vmul.f32 %v345, 0.6931472
    %v347 = vsub.f32 %v340, %v346
    %348 = vst [vmem:[#allocation12] sm:$0xff] %v347
    %s349 = scalar_lea.vmem [#allocation2], 16
    %v350 = vld [vmem:[%s349] sm:$0xff]
    %v351 = vld [vmem:[%s349 + $0x8] sm:$0xff]
    %352 = vmatpush.msra.mxu0 %v290
    %353 = vmatpush.msra.mxu0 %v288
    %354 = vmatpush.msra.mxu0 %v286
    %355 = vmatpush.msra.mxu0 %v284
    %356 = vmatpush.msra.mxu0 %v282
    %357 = vmatpush.msra.mxu0 %v280
    %358 = vmatpush.msra.mxu0 %v278
    %359 = vmatpush.msra.mxu0 %v276
    %360 = vmatpush.msra.mxu0 %v274
    %361 = vmatpush.msra.mxu0 %v272
    %362 = vmatpush.msra.mxu0 %v270
    %363 = vmatpush.msra.mxu0 %v268
    %364 = vmatpush.msra.mxu0 %v266
    %365 = vmatpush.msra.mxu0 %v264
    %366 = vmatpush.msra.mxu0 %v262
    %367 = vmatpush.msra.mxu0 %v260
    %368 = vmatmul.f32.gmra.mxu0 %v337
    %v369 = vpop.f32.mrf.mxu0
    %v370 = vadd.f32 0.0, %v369
    %371 = vdwg.mxu0
    %372 = vmatpush.msra.mxu0 %v291
    %373 = vmatpush.msra.mxu0 %v289
    %374 = vmatpush.msra.mxu0 %v287
    %375 = vmatpush.msra.mxu0 %v285
    %376 = vmatpush.msra.mxu0 %v283
    %377 = vmatpush.msra.mxu0 %v281
    %378 = vmatpush.msra.mxu0 %v279
    %379 = vmatpush.msra.mxu0 %v277
    %380 = vmatpush.msra.mxu0 %v275
    %381 = vmatpush.msra.mxu0 %v273
    %382 = vmatpush.msra.mxu0 %v271
    %383 = vmatpush.msra.mxu0 %v269
    %384 = vmatpush.msra.mxu0 %v267
    %385 = vmatpush.msra.mxu0 %v265
    %386 = vmatpush.msra.mxu0 %v263
    %387 = vmatpush.msra.mxu0 %v261
    %388 = vmatmul.f32.gmra.mxu0 %v337
    %v389 = vpop.f32.mrf.mxu0
    %v390 = vadd.f32 0.0, %v389
    %391 = vdwg.mxu0
    %v392 = vadd.f32 %v350, %v370
    %v393 = vadd.f32 %v351, %v390
    %v394 = vtanh.pop %v392
    %395 = vmax.xlane.f32.xlu0 %v393
    %v396 = vpop.xlane.xlu0 %395
    %v397 = vsub.f32 %v393, %v396
    %v398 = vmul.f32 %v397, 1.442695
    %v399 = vpow.pop %v398
    %400 = vadd.xlane.f32.xlu0 %v399
    %v401 = vpop.xlane.xlu0 %400
    %v402 = vlog2.pop %v401
    %v403 = vmul.f32 %v402, 0.6931472
    %v404 = vsub.f32 %v397, %v403
    %s405 = scalar_lea.vmem [#allocation12], 8
    %406 = vst [vmem:[%s405] sm:$0xff] %v404
    %s407 = scalar_lea.vmem [#allocation2], 32
    %v408 = vld [vmem:[%s407] sm:$0xff]
    %v409 = vld [vmem:[%s407 + $0x8] sm:$0xff]
    %410 = vmatpush.msra.mxu0 %v290
    %411 = vmatpush.msra.mxu0 %v288
    %412 = vmatpush.msra.mxu0 %v286
    %413 = vmatpush.msra.mxu0 %v284
    %414 = vmatpush.msra.mxu0 %v282
    %415 = vmatpush.msra.mxu0 %v280
    %416 = vmatpush.msra.mxu0 %v278
    %417 = vmatpush.msra.mxu0 %v276
    %418 = vmatpush.msra.mxu0 %v274
    %419 = vmatpush.msra.mxu0 %v272
    %420 = vmatpush.msra.mxu0 %v270
    %421 = vmatpush.msra.mxu0 %v268
    %422 = vmatpush.msra.mxu0 %v266
    %423 = vmatpush.msra.mxu0 %v264
    %424 = vmatpush.msra.mxu0 %v262
    %425 = vmatpush.msra.mxu0 %v260
    %426 = vmatmul.f32.gmra.mxu0 %v394
    %v427 = vpop.f32.mrf.mxu0
    %v428 = vadd.f32 0.0, %v427
    %429 = vdwg.mxu0
    %430 = vmatpush.msra.mxu0 %v291
    %431 = vmatpush.msra.mxu0 %v289
    %432 = vmatpush.msra.mxu0 %v287
    %433 = vmatpush.msra.mxu0 %v285
    %434 = vmatpush.msra.mxu0 %v283
    %435 = vmatpush.msra.mxu0 %v281
    %436 = vmatpush.msra.mxu0 %v279
    %437 = vmatpush.msra.mxu0 %v277
    %438 = vmatpush.msra.mxu0 %v275
    %439 = vmatpush.msra.mxu0 %v273
    %440 = vmatpush.msra.mxu0 %v271
    %441 = vmatpush.msra.mxu0 %v269
    %442 = vmatpush.msra.mxu0 %v267
    %443 = vmatpush.msra.mxu0 %v265
    %444 = vmatpush.msra.mxu0 %v263
    %445 = vmatpush.msra.mxu0 %v261
    %446 = vmatmul.f32.gmra.mxu0 %v394
    %v447 = vpop.f32.mrf.mxu0
    %v448 = vadd.f32 0.0, %v447
    %449 = vdwg.mxu0
    %v450 = vadd.f32 %v408, %v428
    %v451 = vadd.f32 %v409, %v448
    %v452 = vtanh.pop %v450
    %453 = vmax.xlane.f32.xlu0 %v451
    %v454 = vpop.xlane.xlu0 %453
    %v455 = vsub.f32 %v451, %v454
    %v456 = vmul.f32 %v455, 1.442695
    %v457 = vpow.pop %v456
    %458 = vadd.xlane.f32.xlu0 %v457
    %v459 = vpop.xlane.xlu0 %458
    %v460 = vlog2.pop %v459
    %v461 = vmul.f32 %v460, 0.6931472
    %v462 = vsub.f32 %v455, %v461
    %s463 = scalar_lea.vmem [#allocation12], 16
    %464 = vst [vmem:[%s463] sm:$0xff] %v462
    %s465 = scalar_lea.vmem [#allocation2], 48
    %v466 = vld [vmem:[%s465] sm:$0xff]
    %v467 = vld [vmem:[%s465 + $0x8] sm:$0xff]
    %468 = vmatpush.msra.mxu0 %v290
    %469 = vmatpush.msra.mxu0 %v288
    %470 = vmatpush.msra.mxu0 %v286
    %471 = vmatpush.msra.mxu0 %v284
    %472 = vmatpush.msra.mxu0 %v282
    %473 = vmatpush.msra.mxu0 %v280
    %474 = vmatpush.msra.mxu0 %v278
    %475 = vmatpush.msra.mxu0 %v276
    %476 = vmatpush.msra.mxu0 %v274
    %477 = vmatpush.msra.mxu0 %v272
    %478 = vmatpush.msra.mxu0 %v270
    %479 = vmatpush.msra.mxu0 %v268
    %480 = vmatpush.msra.mxu0 %v266
    %481 = vmatpush.msra.mxu0 %v264
    %482 = vmatpush.msra.mxu0 %v262
    %483 = vmatpush.msra.mxu0 %v260
    %484 = vmatmul.f32.gmra.mxu0 %v452
    %v485 = vpop.f32.mrf.mxu0
    %v486 = vadd.f32 0.0, %v485
    %487 = vdwg.mxu0
    %488 = vmatpush.msra.mxu0 %v291
    %489 = vmatpush.msra.mxu0 %v289
    %490 = vmatpush.msra.mxu0 %v287
    %491 = vmatpush.msra.mxu0 %v285
    %492 = vmatpush.msra.mxu0 %v283
    %493 = vmatpush.msra.mxu0 %v281
    %494 = vmatpush.msra.mxu0 %v279
    %495 = vmatpush.msra.mxu0 %v277
    %496 = vmatpush.msra.mxu0 %v275
    %497 = vmatpush.msra.mxu0 %v273
    %498 = vmatpush.msra.mxu0 %v271
    %499 = vmatpush.msra.mxu0 %v269
    %500 = vmatpush.msra.mxu0 %v267
    %501 = vmatpush.msra.mxu0 %v265
    %502 = vmatpush.msra.mxu0 %v263
    %503 = vmatpush.msra.mxu0 %v261
    %504 = vmatmul.f32.gmra.mxu0 %v452
    %v505 = vpop.f32.mrf.mxu0
    %v506 = vadd.f32 0.0, %v505
    %507 = vdwg.mxu0
    %v508 = vadd.f32 %v466, %v486
    %v509 = vadd.f32 %v467, %v506
    %v510 = vtanh.pop %v508
    %511 = vmax.xlane.f32.xlu0 %v509
    %v512 = vpop.xlane.xlu0 %511
    %v513 = vsub.f32 %v509, %v512
    %v514 = vmul.f32 %v513, 1.442695
    %v515 = vpow.pop %v514
    %516 = vadd.xlane.f32.xlu0 %v515
    %v517 = vpop.xlane.xlu0 %516
    %v518 = vlog2.pop %v517
    %v519 = vmul.f32 %v518, 0.6931472
    %v520 = vsub.f32 %v513, %v519
    %s521 = scalar_lea.vmem [#allocation12], 24
    %522 = vst [vmem:[%s521] sm:$0xff] %v520
    %s523 = scalar_lea.vmem [#allocation2], 64
    %v524 = vld [vmem:[%s523] sm:$0xff]
    %v525 = vld [vmem:[%s523 + $0x8] sm:$0xff]
    %526 = vmatpush.msra.mxu0 %v290
    %527 = vmatpush.msra.mxu0 %v288
    %528 = vmatpush.msra.mxu0 %v286
    %529 = vmatpush.msra.mxu0 %v284
    %530 = vmatpush.msra.mxu0 %v282
    %531 = vmatpush.msra.mxu0 %v280
    %532 = vmatpush.msra.mxu0 %v278
    %533 = vmatpush.msra.mxu0 %v276
    %534 = vmatpush.msra.mxu0 %v274
    %535 = vmatpush.msra.mxu0 %v272
    %536 = vmatpush.msra.mxu0 %v270
    %537 = vmatpush.msra.mxu0 %v268
    %538 = vmatpush.msra.mxu0 %v266
    %539 = vmatpush.msra.mxu0 %v264
    %540 = vmatpush.msra.mxu0 %v262
    %541 = vmatpush.msra.mxu0 %v260
    %542 = vmatmul.f32.gmra.mxu0 %v510
    %v543 = vpop.f32.mrf.mxu0
    %v544 = vadd.f32 0.0, %v543
    %545 = vdwg.mxu0
    %546 = vmatpush.msra.mxu0 %v291
    %547 = vmatpush.msra.mxu0 %v289
    %548 = vmatpush.msra.mxu0 %v287
    %549 = vmatpush.msra.mxu0 %v285
    %550 = vmatpush.msra.mxu0 %v283
    %551 = vmatpush.msra.mxu0 %v281
    %552 = vmatpush.msra.mxu0 %v279
    %553 = vmatpush.msra.mxu0 %v277
    %554 = vmatpush.msra.mxu0 %v275
    %555 = vmatpush.msra.mxu0 %v273
    %556 = vmatpush.msra.mxu0 %v271
    %557 = vmatpush.msra.mxu0 %v269
    %558 = vmatpush.msra.mxu0 %v267
    %559 = vmatpush.msra.mxu0 %v265
    %560 = vmatpush.msra.mxu0 %v263
    %561 = vmatpush.msra.mxu0 %v261
    %562 = vmatmul.f32.gmra.mxu0 %v510
    %v563 = vpop.f32.mrf.mxu0
    %v564 = vadd.f32 0.0, %v563
    %565 = vdwg.mxu0
    %v566 = vadd.f32 %v524, %v544
    %v567 = vadd.f32 %v525, %v564
    %v568 = vtanh.pop %v566
    %569 = vmax.xlane.f32.xlu0 %v567
    %v570 = vpop.xlane.xlu0 %569
    %v571 = vsub.f32 %v567, %v570
    %v572 = vmul.f32 %v571, 1.442695
    %v573 = vpow.pop %v572
    %574 = vadd.xlane.f32.xlu0 %v573
    %v575 = vpop.xlane.xlu0 %574
    %v576 = vlog2.pop %v575
    %v577 = vmul.f32 %v576, 0.6931472
    %v578 = vsub.f32 %v571, %v577
    %s579 = scalar_lea.vmem [#allocation12], 32
    %580 = vst [vmem:[%s579] sm:$0xff] %v578
    %s581 = scalar_lea.vmem [#allocation2], 80
    %v582 = vld [vmem:[%s581] sm:$0xff]
    %v583 = vld [vmem:[%s581 + $0x8] sm:$0xff]
    %584 = vmatpush.msra.mxu0 %v290
    %585 = vmatpush.msra.mxu0 %v288
    %586 = vmatpush.msra.mxu0 %v286
    %587 = vmatpush.msra.mxu0 %v284
    %588 = vmatpush.msra.mxu0 %v282
    %589 = vmatpush.msra.mxu0 %v280
    %590 = vmatpush.msra.mxu0 %v278
    %591 = vmatpush.msra.mxu0 %v276
    %592 = vmatpush.msra.mxu0 %v274
    %593 = vmatpush.msra.mxu0 %v272
    %594 = vmatpush.msra.mxu0 %v270
    %595 = vmatpush.msra.mxu0 %v268
    %596 = vmatpush.msra.mxu0 %v266
    %597 = vmatpush.msra.mxu0 %v264
    %598 = vmatpush.msra.mxu0 %v262
    %599 = vmatpush.msra.mxu0 %v260
    %600 = vmatmul.f32.gmra.mxu0 %v568
    %v601 = vpop.f32.mrf.mxu0
    %v602 = vadd.f32 0.0, %v601
    %603 = vdwg.mxu0
    %604 = vmatpush.msra.mxu0 %v291
    %605 = vmatpush.msra.mxu0 %v289
    %606 = vmatpush.msra.mxu0 %v287
    %607 = vmatpush.msra.mxu0 %v285
    %608 = vmatpush.msra.mxu0 %v283
    %609 = vmatpush.msra.mxu0 %v281
    %610 = vmatpush.msra.mxu0 %v279
    %611 = vmatpush.msra.mxu0 %v277
    %612 = vmatpush.msra.mxu0 %v275
    %613 = vmatpush.msra.mxu0 %v273
    %614 = vmatpush.msra.mxu0 %v271
    %615 = vmatpush.msra.mxu0 %v269
    %616 = vmatpush.msra.mxu0 %v267
    %617 = vmatpush.msra.mxu0 %v265
    %618 = vmatpush.msra.mxu0 %v263
    %619 = vmatpush.msra.mxu0 %v261
    %620 = vmatmul.f32.gmra.mxu0 %v568
    %v621 = vpop.f32.mrf.mxu0
    %v622 = vadd.f32 0.0, %v621
    %623 = vdwg.mxu0
    %v624 = vadd.f32 %v582, %v602
    %v625 = vadd.f32 %v583, %v622
    %v626 = vtanh.pop %v624
    %627 = vmax.xlane.f32.xlu0 %v625
    %v628 = vpop.xlane.xlu0 %627
    %v629 = vsub.f32 %v625, %v628
    %v630 = vmul.f32 %v629, 1.442695
    %v631 = vpow.pop %v630
    %632 = vadd.xlane.f32.xlu0 %v631
    %v633 = vpop.xlane.xlu0 %632
    %v634 = vlog2.pop %v633
    %v635 = vmul.f32 %v634, 0.6931472
    %v636 = vsub.f32 %v629, %v635
    %s637 = scalar_lea.vmem [#allocation12], 40
    %638 = vst [vmem:[%s637] sm:$0xff] %v636
    %s639 = scalar_lea.vmem [#allocation2], 96
    %v640 = vld [vmem:[%s639] sm:$0xff]
    %v641 = vld [vmem:[%s639 + $0x8] sm:$0xff]
    %642 = vmatpush.msra.mxu0 %v290
    %643 = vmatpush.msra.mxu0 %v288
    %644 = vmatpush.msra.mxu0 %v286
    %645 = vmatpush.msra.mxu0 %v284
    %646 = vmatpush.msra.mxu0 %v282
    %647 = vmatpush.msra.mxu0 %v280
    %648 = vmatpush.msra.mxu0 %v278
    %649 = vmatpush.msra.mxu0 %v276
    %650 = vmatpush.msra.mxu0 %v274
    %651 = vmatpush.msra.mxu0 %v272
    %652 = vmatpush.msra.mxu0 %v270
    %653 = vmatpush.msra.mxu0 %v268
    %654 = vmatpush.msra.mxu0 %v266
    %655 = vmatpush.msra.mxu0 %v264
    %656 = vmatpush.msra.mxu0 %v262
    %657 = vmatpush.msra.mxu0 %v260
    %658 = vmatmul.f32.gmra.mxu0 %v626
    %v659 = vpop.f32.mrf.mxu0
    %v660 = vadd.f32 0.0, %v659
    %661 = vdwg.mxu0
    %662 = vmatpush.msra.mxu0 %v291
    %663 = vmatpush.msra.mxu0 %v289
    %664 = vmatpush.msra.mxu0 %v287
    %665 = vmatpush.msra.mxu0 %v285
    %666 = vmatpush.msra.mxu0 %v283
    %667 = vmatpush.msra.mxu0 %v281
    %668 = vmatpush.msra.mxu0 %v279
    %669 = vmatpush.msra.mxu0 %v277
    %670 = vmatpush.msra.mxu0 %v275
    %671 = vmatpush.msra.mxu0 %v273
    %672 = vmatpush.msra.mxu0 %v271
    %673 = vmatpush.msra.mxu0 %v269
    %674 = vmatpush.msra.mxu0 %v267
    %675 = vmatpush.msra.mxu0 %v265
    %676 = vmatpush.msra.mxu0 %v263
    %677 = vmatpush.msra.mxu0 %v261
    %678 = vmatmul.f32.gmra.mxu0 %v626
    %v679 = vpop.f32.mrf.mxu0
    %v680 = vadd.f32 0.0, %v679
    %681 = vdwg.mxu0
    %v682 = vadd.f32 %v640, %v660
    %v683 = vadd.f32 %v641, %v680
    %v684 = vtanh.pop %v682
    %685 = vmax.xlane.f32.xlu0 %v683
    %v686 = vpop.xlane.xlu0 %685
    %v687 = vsub.f32 %v683, %v686
    %v688 = vmul.f32 %v687, 1.442695
    %v689 = vpow.pop %v688
    %690 = vadd.xlane.f32.xlu0 %v689
    %v691 = vpop.xlane.xlu0 %690
    %v692 = vlog2.pop %v691
    %v693 = vmul.f32 %v692, 0.6931472
    %v694 = vsub.f32 %v687, %v693
    %s695 = scalar_lea.vmem [#allocation12], 48
    %696 = vst [vmem:[%s695] sm:$0xff] %v694
    %s697 = scalar_lea.vmem [#allocation2], 112
    %v698 = vld [vmem:[%s697] sm:$0xff]
    %v699 = vld [vmem:[%s697 + $0x8] sm:$0xff]
    %700 = vmatpush.msra.mxu0 %v290
    %701 = vmatpush.msra.mxu0 %v288
    %702 = vmatpush.msra.mxu0 %v286
    %703 = vmatpush.msra.mxu0 %v284
    %704 = vmatpush.msra.mxu0 %v282
    %705 = vmatpush.msra.mxu0 %v280
    %706 = vmatpush.msra.mxu0 %v278
    %707 = vmatpush.msra.mxu0 %v276
    %708 = vmatpush.msra.mxu0 %v274
    %709 = vmatpush.msra.mxu0 %v272
    %710 = vmatpush.msra.mxu0 %v270
    %711 = vmatpush.msra.mxu0 %v268
    %712 = vmatpush.msra.mxu0 %v266
    %713 = vmatpush.msra.mxu0 %v264
    %714 = vmatpush.msra.mxu0 %v262
    %715 = vmatpush.msra.mxu0 %v260
    %716 = vmatmul.f32.gmra.mxu0 %v684
    %v717 = vpop.f32.mrf.mxu0
    %v718 = vadd.f32 0.0, %v717
    %719 = vdwg.mxu0
    %720 = vmatpush.msra.mxu0 %v291
    %721 = vmatpush.msra.mxu0 %v289
    %722 = vmatpush.msra.mxu0 %v287
    %723 = vmatpush.msra.mxu0 %v285
    %724 = vmatpush.msra.mxu0 %v283
    %725 = vmatpush.msra.mxu0 %v281
    %726 = vmatpush.msra.mxu0 %v279
    %727 = vmatpush.msra.mxu0 %v277
    %728 = vmatpush.msra.mxu0 %v275
    %729 = vmatpush.msra.mxu0 %v273
    %730 = vmatpush.msra.mxu0 %v271
    %731 = vmatpush.msra.mxu0 %v269
    %732 = vmatpush.msra.mxu0 %v267
    %733 = vmatpush.msra.mxu0 %v265
    %734 = vmatpush.msra.mxu0 %v263
    %735 = vmatpush.msra.mxu0 %v261
    %736 = vmatmul.f32.gmra.mxu0 %v684
    %v737 = vpop.f32.mrf.mxu0
    %v738 = vadd.f32 0.0, %v737
    %739 = vdwg.mxu0
    %v740 = vadd.f32 %v698, %v718
    %v741 = vadd.f32 %v699, %v738
    %v742 = vtanh.pop %v740
    %743 = vmax.xlane.f32.xlu0 %v741
    %v744 = vpop.xlane.xlu0 %743
    %v745 = vsub.f32 %v741, %v744
    %v746 = vmul.f32 %v745, 1.442695
    %v747 = vpow.pop %v746
    %748 = vadd.xlane.f32.xlu0 %v747
    %v749 = vpop.xlane.xlu0 %748
    %v750 = vlog2.pop %v749
    %v751 = vmul.f32 %v750, 0.6931472
    %v752 = vsub.f32 %v745, %v751
    %s753 = scalar_lea.vmem [#allocation12], 56
    %754 = vst [vmem:[%s753] sm:$0xff] %v752
    %755 = vst [vmem:[#allocation13] sm:$0xff] %v742
    // Predicated region
    $region46: #{tpu_custom_call.1} parent=1 // pred_check
      _
    $region47: #{tpu_custom_call.1} parent=1 // pred_check_branch
      %757 = sbr.rel (0) target = $region49
    $region48: #{tpu_custom_call.1} parent=1 // pred_region
      %759 = vsyncadd [#allocation5], 0
      %s760 = sshll.u32 [#allocation12], 4
      %s761 = int_to_ptr.vmem [resolvable:$true] %s760
      %s762 = sshll.u32 %s5, 4
      %s763 = int_to_ptr.hbm [resolvable:$true] %s762
      %768 = dma.vmem_to_hbm [thread:$0]  %s761, 1024, %s763, [#allocation5], 128, 128, 8
    $region49: #{tpu_custom_call.1} parent=1 // pred_fallthru
      _
    // Predicated region
    $region50: #{tpu_custom_call.1} parent=1 // pred_check
      _
    $region51: #{tpu_custom_call.1} parent=1 // pred_check_branch
      %770 = sbr.rel (0) target = $region53
    $region52: #{tpu_custom_call.1} parent=1 // pred_region
      %772 = vsyncadd [#allocation14], 0
      %s774 = sshll.u32 [#allocation13], 4
      %s775 = int_to_ptr.vmem [resolvable:$true] %s774
      %s776 = sshll.u32 %s6, 4
      %s777 = int_to_ptr.hbm [resolvable:$true] %s776
      %779 = dma.vmem_to_hbm [thread:$0]  %s775, 128, %s777, [#allocation14]
    $region53: #{tpu_custom_call.1} parent=1 // pred_fallthru
      _
    // Predicated region
    $region54: #{tpu_custom_call.1} parent=1 // pred_check
      _
    $region55: #{tpu_custom_call.1} parent=1 // pred_check_branch
      %781 = sbr.rel (0) target = $region57
    $region56: #{tpu_custom_call.1} parent=1 // pred_region
      %783 = dma.done [#allocation5], 1024
    $region57: #{tpu_custom_call.1} parent=1 // pred_fallthru
      _
    // Predicated region
    $region58: #{tpu_custom_call.1} parent=1 // pred_check
      _
    $region59: #{tpu_custom_call.1} parent=1 // pred_check_branch
      %785 = sbr.rel (0) target = $region61
    $region60: #{tpu_custom_call.1} parent=1 // pred_region
      %787 = dma.done [#allocation14], 128
    $region61: #{tpu_custom_call.1} parent=1 // pred_fallthru
      _
    %788 = vsyncpa [#allocation4], 1
    %789 = vsyncpa [#allocation7], 1
    %790 = vsyncpa [#allocation10], 1
    %791 = vsyncpa [#allocation5], 1
    %792 = vsyncpa [#allocation14], 1

</llo_original>
